<compile_context>
chip_gen: v6e
topology: v6e:2x2x1
jax: 0.10.0
libtpu: 0.0.40
codegen_flags: <defaults>
</compile_context>

<pallas_src>
import functools
import math

import jax
import jax.numpy as jnp
from jax.experimental import pallas as pl
from jax.experimental.pallas import tpu as pltpu


def _round_up(x, m):
    return (x + m - 1) // m * m


def _pick_lane_tile(dim, max_tile):
    """Largest multiple of 128 that divides `dim` (dim is a multiple of 128)."""
    t = min(max_tile, dim)
    while dim % t != 0:
        t -= 128
    return t


def choose_tiles(M, D, *, tm_max=512, tn_max=512, tk_max=2048):
    """Pick (tm, tn, tk, Mp, Dp) for an [M, D] x [D, D] SwiGLU."""
    Dp = _round_up(D, 128)
    tn = _pick_lane_tile(Dp, min(tn_max, Dp))
    # Large K tile: collapse the reduction loop entirely for moderate D so the
    # f32 accumulator is read-modified-written only once per output tile.
    tk = Dp if Dp <= tk_max else _pick_lane_tile(Dp, tk_max)
    tm = min(tm_max, _round_up(M, 16))      # bf16 sublane packing: tm % 16 == 0
    Mp = _round_up(M, tm)
    # v7x has two TensorCores; "parallel" axes only help with >= 2 blocks.
    if (Mp // tm) * (Dp // tn) < 2:
        if Dp // tn == 1 and tn % 256 == 0:
            tn //= 2
        elif Mp // tm == 1 and tm % 32 == 0:
            tm //= 2
    return tm, tn, tk, Mp, Dp


def _interleave_cols(a, b, tn):
    """Column-interleave two (R, N) arrays in tn-wide tiles: [A0 B0 A1 B1 ...]."""
    r, n = a.shape
    nt = n // tn
    return jnp.stack(
        [a.reshape(r, nt, tn), b.reshape(r, nt, tn)], axis=2
    ).reshape(r, 2 * n)


def prepare_swiglu_weights(wW, bW, wV, bV, *, tn, Dp, compute_dtype=jnp.bfloat16):
    """One-time weight prep (hoist to weight-load time, not the per-call path):
    pad feature dims to lane-aligned Dp, cast weights to the bf16 compute dtype
    (biases stay f32) and interleave W/V column tiles so the kernel streams a
    single fused (Dp, 2*Dp) weight and a single (1, 2*Dp) bias."""
    D = wW.shape[0]
    p = Dp - D
    if p:
        wW = jnp.pad(wW, ((0, p), (0, p)))
        wV = jnp.pad(wV, ((0, p), (0, p)))
        bW = jnp.pad(bW, ((0, 0), (0, p)))
        bV = jnp.pad(bV, ((0, 0), (0, p)))
    w_fused = _interleave_cols(wW.astype(compute_dtype),
                               wV.astype(compute_dtype), tn)
    b_fused = _interleave_cols(bW.astype(jnp.float32),
                               bV.astype(jnp.float32), tn)
    return w_fused, b_fused


def _swiglu_kernel(x_ref, wf_ref, bf_ref, o_ref, acc_ref, *, tn):
    k = pl.program_id(2)

    @pl.when(k == 0)
    def _init():
        # Fold the fused bias into the accumulator init: the finalize then
        # only does the activation.
        acc_ref[...] = jnp.broadcast_to(bf_ref[...], acc_ref.shape)

    # One MXU dot per k-step computes BOTH projections (bf16 in, f32 acc).
    acc_ref[...] += jnp.dot(x_ref[...], wf_ref[...],
                            preferred_element_type=jnp.float32)

    @pl.when(k == pl.num_programs(2) - 1)
    def _finalize():
        wv = acc_ref[...]                    # (tm, 2*tn) f32, bias included
        w = wv[:, :tn]                       # W projection tile
        v = wv[:, tn:]                       # V projection tile
        # sigmoid(v) = 1/(1+exp(-v)): EUP exp + exact reciprocal (bias is
        # already folded at init, so keep the exact recip for a tight check).
        sig = pl.reciprocal(1.0 + jnp.exp(-v), approx=False)
        o_ref[...] = (w * (v * sig)).astype(o_ref.dtype)


def swiglu_forward(x, w_fused, b_fused, *, tiles, compute_dtype=jnp.bfloat16):
    """x: (..., D); w_fused: (Dp, 2*Dp) fused/interleaved; b_fused: (1, 2*Dp)."""
    tm, tn, tk, Mp, Dp = tiles
    orig_shape = x.shape
    out_dtype = x.dtype
    D = x.shape[-1]
    x2d = x.reshape(-1, D)
    M = x2d.shape[0]

    x_c = x2d.astype(compute_dtype)
    if Mp != M or Dp != D:                   # skip the pad pass when possible
        x_c = jnp.pad(x_c, ((0, Mp - M), (0, Dp - D)))

    grid = (Mp // tm, Dp // tn, Dp // tk)

    c_bytes = jnp.dtype(compute_dtype).itemsize
    o_bytes = jnp.dtype(out_dtype).itemsize
    cost = pl.CostEstimate(
        flops=4 * Mp * Dp * Dp + 4 * Mp * Dp,
        transcendentals=Mp * Dp,
        bytes_accessed=(c_bytes * Mp * Dp * (Dp // tn)         # x re-read per N tile
                        + c_bytes * 2 * Dp * Dp * (Mp // tm)   # fused weights per M tile
                        + 4 * 2 * Dp * (Mp // tm) * (Dp // tn) # fused bias
                        + o_bytes * Mp * Dp),                  # output written once
    )

    # Double-buffered inputs/output + the f32 accumulator, with headroom.
    tile_vmem = (2 * tm * tk * c_bytes           # x
                 + 2 * tk * 2 * tn * c_bytes     # fused W|V
                 + 2 * 2 * tn * 4                # fused bias
                 + 2 * tm * tn * o_bytes         # output
                 + tm * 2 * tn * 4)              # accumulator
    vmem_limit = int(min(max(2 * tile_vmem, 32 * 1024 * 1024), 48 * 1024 * 1024))

    out_p = pl.pallas_call(
        functools.partial(_swiglu_kernel, tn=tn),
        out_shape=jax.ShapeDtypeStruct((Mp, Dp), out_dtype),
        grid_spec=pltpu.PrefetchScalarGridSpec(
            num_scalar_prefetch=0,
            grid=grid,
            in_specs=[
                pl.BlockSpec((tm, tk), lambda i, j, k: (i, k)),      # x tile
                pl.BlockSpec((tk, 2 * tn), lambda i, j, k: (k, j)),  # fused W|V
                pl.BlockSpec((1, 2 * tn), lambda i, j, k: (0, j)),   # fused bias
            ],
            out_specs=pl.BlockSpec((tm, tn), lambda i, j, k: (i, j)),
            scratch_shapes=[pltpu.VMEM((tm, 2 * tn), jnp.float32)],
        ),
        compiler_params=pltpu.CompilerParams(
            dimension_semantics=("parallel", "parallel", "arbitrary"),
            vmem_limit_bytes=vmem_limit),
        cost_estimate=cost,
    )(x_c, w_fused, b_fused)

    return out_p[:M, :D].reshape(orig_shape)


def swiglu_apply(x, wW, bW, wV, bV, *, compute_dtype=jnp.bfloat16):
    """Convenience wrapper matching the PyTorch module's forward.
    NOTE: in a real model, hoist prepare_swiglu_weights() out of the per-call
    path — it is inlined here only to keep a single entry point."""
    D = x.shape[-1]
    M = math.prod(x.shape[:-1])
    tiles = choose_tiles(M, D)
    _, tn, _, _, Dp = tiles
    w_fused, b_fused = prepare_swiglu_weights(
        wW, bW, wV, bV, tn=tn, Dp=Dp, compute_dtype=compute_dtype)
    return swiglu_forward(x, w_fused, b_fused, tiles=tiles,
                          compute_dtype=compute_dtype)


if __name__ == "__main__":
    key = jax.random.PRNGKey(0)
    batch, seq, hidden = 2, 8, 32

    k_x, k_ww, k_bw, k_wv, k_bv = jax.random.split(key, 5)
    x = jax.random.normal(k_x, (batch, seq, hidden), dtype=jnp.float32)

    # nn.Linear-style init (uniform, bound 1/sqrt(fan_in)), stored [in, out]
    # so y = x @ W + b (equivalent to PyTorch weight.T).
    bound = 1.0 / (hidden ** 0.5)
    wW = jax.random.uniform(k_ww, (hidden, hidden), jnp.float32, -bound, bound)
    bW = jax.random.uniform(k_bw, (1, hidden), jnp.float32, -bound, bound)
    wV = jax.random.uniform(k_wv, (hidden, hidden), jnp.float32, -bound, bound)
    bV = jax.random.uniform(k_bv, (1, hidden), jnp.float32, -bound, bound)

    # Intended usage: prepare (pad / cast / fuse) the weights ONCE, then run.
    M, D = batch * seq, hidden
    tiles = choose_tiles(M, D)
    _, tn, _, _, Dp = tiles
    w_fused, b_fused = prepare_swiglu_weights(wW, bW, wV, bV, tn=tn, Dp=Dp)

    out = jax.block_until_ready(swiglu_forward(x, w_fused, b_fused, tiles=tiles))

    # Reference mirrors the kernel's bf16 operand quantization (accumulation,
    # bias and epilogue stay f32 in both), isolating kernel bugs from the
    # expected bf16 rounding of the operands.
    def reference(x, wW, bW, wV, bV):
        q = lambda a: a.astype(jnp.bfloat16).astype(jnp.float32)
        hp = jax.lax.Precision.HIGHEST
        v = jnp.matmul(q(x), q(wV), precision=hp) + bV
        w = jnp.matmul(q(x), q(wW), precision=hp) + bW
        return w * (v * jax.nn.sigmoid(v))

    ref = reference(x, wW, bW, wV, bV)
    assert out.shape == x.shape
    assert jnp.allclose(out, ref, atol=1e-3, rtol=1e-3), "mismatch vs reference"

    print("KERNEL_OK")
</pallas_src>

<mosaic_0001>
module attributes {stable_mosaic.version = 11 : i64} {
  func.func @_swiglu_kernel(%arg0: i32, %arg1: i32, %arg2: i32, %arg3: memref<16x128xbf16, #tpu.memory_space<vmem>>, %arg4: memref<128x256xbf16, #tpu.memory_space<vmem>>, %arg5: memref<1x256xf32, #tpu.memory_space<vmem>>, %arg6: memref<16x128xf32, #tpu.memory_space<vmem>>, %arg7: memref<16x256xf32, #tpu.memory_space<vmem>>) attributes {dimension_semantics = [#tpu.dimension_semantics<parallel>, #tpu.dimension_semantics<parallel>, #tpu.dimension_semantics<arbitrary>], iteration_bounds = array<i64: 1, 1, 1>, scalar_prefetch = 0 : i64, scratch_operands = 1 : i64, tpu.core_type = #tpu.core_type<tc>, window_params = [{transform_indices = @transform_0, window_bounds = array<i64: 16, 128>}, {transform_indices = @transform_1, window_bounds = array<i64: 128, 256>}, {transform_indices = @transform_2, window_bounds = array<i64: 1, 256>}, {transform_indices = @transform_3, window_bounds = array<i64: 16, 128>}]} {
    %c0_i32 = arith.constant 0 : i32
    %0 = arith.cmpi eq, %arg2, %c0_i32 : i32
    %1 = arith.extui %0 : i1 to i32
    %c0_i32_0 = arith.constant 0 : i32
    %2 = arith.cmpi ne, %1, %c0_i32_0 : i32
    scf.if %2 {
      %c0_10 = arith.constant 0 : index
      %c0_11 = arith.constant 0 : index
      %12 = vector.load %arg5[%c0_10, %c0_11] : memref<1x256xf32, #tpu.memory_space<vmem>>, vector<1x256xf32>
      %13 = vector.shape_cast %12 : vector<1x256xf32> to vector<1x256xf32>
      %14 = vector.broadcast %13 : vector<1x256xf32> to vector<16x256xf32>
      %c0_12 = arith.constant 0 : index
      %c0_13 = arith.constant 0 : index
      %15 = vector.load %arg7[%c0_12, %c0_13] : memref<16x256xf32, #tpu.memory_space<vmem>>, vector<16x256xf32>
      tpu.vector_store %arg7[%c0_12, %c0_13], %14 {strides = array<i32>} : memref<16x256xf32, #tpu.memory_space<vmem>>, vector<16x256xf32>,
    } else {
    }
    %c0 = arith.constant 0 : index
    %c0_1 = arith.constant 0 : index
    %3 = vector.load %arg7[%c0, %c0_1] : memref<16x256xf32, #tpu.memory_space<vmem>>, vector<16x256xf32>
    %c0_2 = arith.constant 0 : index
    %c0_3 = arith.constant 0 : index
    %4 = vector.load %arg3[%c0_2, %c0_3] : memref<16x128xbf16, #tpu.memory_space<vmem>>, vector<16x128xbf16>
    %c0_4 = arith.constant 0 : index
    %c0_5 = arith.constant 0 : index
    %5 = vector.load %arg4[%c0_4, %c0_5] : memref<128x256xbf16, #tpu.memory_space<vmem>>, vector<128x256xbf16>
    %cst = arith.constant dense<0.000000e+00> : vector<16x256xf32>
    %6 = tpu.matmul %4, %5, %cst {dimension_numbers = #tpu.dot_dimension_numbers<[1], [0], [0], [1], [0, 0, 1, 1], [], []>} : vector<16x128xbf16>, vector<128x256xbf16>, vector<16x256xf32> -> vector<16x256xf32>
    %7 = arith.addf %3, %6 : vector<16x256xf32>
    %c0_6 = arith.constant 0 : index
    %c0_7 = arith.constant 0 : index
    %8 = vector.load %arg7[%c0_6, %c0_7] : memref<16x256xf32, #tpu.memory_space<vmem>>, vector<16x256xf32>
    tpu.vector_store %arg7[%c0_6, %c0_7], %7 {strides = array<i32>} : memref<16x256xf32, #tpu.memory_space<vmem>>, vector<16x256xf32>,
    %c0_i32_8 = arith.constant 0 : i32
    %9 = arith.cmpi eq, %arg2, %c0_i32_8 : i32
    %10 = arith.extui %9 : i1 to i32
    %c0_i32_9 = arith.constant 0 : i32
    %11 = arith.cmpi ne, %10, %c0_i32_9 : i32
    scf.if %11 {
      %c0_10 = arith.constant 0 : index
      %c0_11 = arith.constant 0 : index
      %12 = vector.load %arg7[%c0_10, %c0_11] : memref<16x256xf32, #tpu.memory_space<vmem>>, vector<16x256xf32>
      %13 = vector.extract_strided_slice %12 {offsets = [0, 0], sizes = [16, 128], strides = [1, 1]} : vector<16x256xf32> to vector<16x128xf32>
      %14 = vector.extract_strided_slice %12 {offsets = [0, 128], sizes = [16, 128], strides = [1, 1]} : vector<16x256xf32> to vector<16x128xf32>
      %cst_12 = arith.constant 0.000000e+00 : f32
      %15 = vector.broadcast %cst_12 : f32 to vector<16x128xf32>
      %16 = arith.subf %15, %14 : vector<16x128xf32>
      %17 = math.exp %16 : vector<16x128xf32>
      %cst_13 = arith.constant 1.000000e+00 : f32
      %18 = vector.broadcast %cst_13 : f32 to vector<16x128xf32>
      %19 = arith.addf %18, %17 : vector<16x128xf32>
      %20 = tpu.reciprocal %19 : vector<16x128xf32> -> vector<16x128xf32>
      %21 = arith.mulf %14, %20 : vector<16x128xf32>
      %22 = arith.mulf %13, %21 : vector<16x128xf32>
      %c0_14 = arith.constant 0 : index
      %c0_15 = arith.constant 0 : index
      %23 = vector.load %arg6[%c0_14, %c0_15] : memref<16x128xf32, #tpu.memory_space<vmem>>, vector<16x128xf32>
      tpu.vector_store %arg6[%c0_14, %c0_15], %22 {strides = array<i32>} : memref<16x128xf32, #tpu.memory_space<vmem>>, vector<16x128xf32>,
    } else {
    }
    return
  }
  func.func @transform_0(%arg0: i32, %arg1: i32, %arg2: i32) -> (i32, i32) {
    %c0_i32 = arith.constant 0 : i32
    return %arg0, %arg2 : i32, i32
  }
  func.func @transform_1(%arg0: i32, %arg1: i32, %arg2: i32) -> (i32, i32) {
    %c0_i32 = arith.constant 0 : i32
    return %arg2, %arg1 : i32, i32
  }
  func.func @transform_2(%arg0: i32, %arg1: i32, %arg2: i32) -> (i32, i32) {
    %c0_i32 = arith.constant 0 : i32
    %c0_i32_0 = arith.constant 0 : i32
    return %c0_i32, %arg1 : i32, i32
  }
  func.func @transform_3(%arg0: i32, %arg1: i32, %arg2: i32) -> (i32, i32) {
    %c0_i32 = arith.constant 0 : i32
    return %arg0, %arg1 : i32, i32
  }
}

</mosaic_0001>

<llo_original>
// kernel: tpu_custom_call.1
$region0: #{tpu_custom_call.1}
  #allocation0 [shape = 'u32[]', space=smem, size = 0x4, offset = 0x4, fixed_abs, tag = 'smem constant byte address 0x4 - core index']
  #allocation1 [shape = 'u32[144,128]{1,0:T(1,128)}', space=vmem, size = 0x12000, scoped, tag = 'internal scratch']
  #allocation2 [shape = 'f32[16,256]{1,0:T(8,128)}', space=vmem, size = 0x4000, scoped, tag = 'scratch operand']
  %s0 = inlined_call_operand.hbm [shape: bf16[16,128], index: 0, kind: input, shape index: {}]
  %s1 = inlined_call_operand.hbm [shape: bf16[128,256], index: 1, kind: input, shape index: {}]
  %s2 = inlined_call_operand.vmem [shape: f32[1,256], index: 2, kind: input, shape index: {}]
  %s3 = inlined_call_operand.hbm [shape: f32[16,128], index: 3, kind: output, shape index: {}]
  %s4 = sld [smem:[#allocation0]]
  $region38: #{tpu_custom_call.1} parent=0
    _
  %s6 = ssub.s32 1, %s4
  %s7 = scalar_select 0, %s6, %s4
  $region1: #{tpu_custom_call.1} parent=0
    #allocation3 [shape = 'u8[4096]{0}', space=vmem, size = 0x1000, scoped, tag = 'input window, operand 0, single buffered']
    #allocation4 [shape = 's32[1]{0}', space=sflag, size = 0x4, scoped, tag = 'scoped memory for tpu_custom_call.1']
    #allocation5 [shape = 's32[1]{0}', space=sflag, size = 0x4, scoped, tag = 'scoped memory for tpu_custom_call.1']
    #allocation6 [shape = 'u8[65536]{0}', space=vmem, size = 0x10000, scoped, tag = 'input window, operand 1, single buffered']
    #allocation7 [shape = 's32[1]{0}', space=sflag, size = 0x4, scoped, tag = 'scoped memory for tpu_custom_call.1']
    #allocation8 [shape = 'u8[8192]{0}', space=vmem, size = 0x2000, scoped, tag = 'output window, operand 0, single buffered']
    %8 = vsyncpa [#allocation4], 0
    %9 = vsyncpa [#allocation7], 0
    %10 = vsyncpa [#allocation5], 0
    // Predicated region
    $region2: #{tpu_custom_call.1} parent=1 // pred_check
      _
    $region3: #{tpu_custom_call.1} parent=1 // pred_check_branch
      %12 = sbr.rel (0) target = $region5
    $region4: #{tpu_custom_call.1} parent=1 // pred_region
      %s14 = ssub.s32 128, 128
      %15 = vsyncadd [#allocation4], %s14
      %s16 = sshll.u32 [#allocation3], 4
      %s17 = int_to_ptr.vmem [resolvable:$true] %s16
      %22 = dma.hbm_to_vmem [thread:$0]  %s0, 128, %s17, [#allocation4], 64, 64, 4
    $region5: #{tpu_custom_call.1} parent=1 // pred_fallthru
      _
    // Predicated region
    $region6: #{tpu_custom_call.1} parent=1 // pred_check
      _
    $region7: #{tpu_custom_call.1} parent=1 // pred_check_branch
      %24 = sbr.rel (0) target = $region9
    $region8: #{tpu_custom_call.1} parent=1 // pred_region
      %s26 = ssub.s32 2048, 2048
      %27 = vsyncadd [#allocation7], %s26
      %s28 = sshll.u32 [#allocation6], 4
      %s29 = int_to_ptr.vmem [resolvable:$true] %s28
      %34 = dma.hbm_to_vmem [thread:$0]  %s1, 2048, %s29, [#allocation7], 128, 128, 8
    $region9: #{tpu_custom_call.1} parent=1 // pred_fallthru
      _
    // Predicated region
    $region10: #{tpu_custom_call.1} parent=1 // pred_check
      _
    $region11: #{tpu_custom_call.1} parent=1 // pred_check_branch
      %36 = sbr.rel (0) target = $region13
    $region12: #{tpu_custom_call.1} parent=1 // pred_region
      _
    $region13: #{tpu_custom_call.1} parent=1 // pred_fallthru
      _
    // Predicated region
    $region14: #{tpu_custom_call.1} parent=1 // pred_check
      _
    $region15: #{tpu_custom_call.1} parent=1 // pred_check_branch
      %38 = sbr.rel (0) target = $region17
    $region16: #{tpu_custom_call.1} parent=1 // pred_region
      %39 = dma.done [#allocation4], 128
    $region17: #{tpu_custom_call.1} parent=1 // pred_fallthru
      _
    // Predicated region
    $region18: #{tpu_custom_call.1} parent=1 // pred_check
      _
    $region19: #{tpu_custom_call.1} parent=1 // pred_check_branch
      %41 = sbr.rel (0) target = $region21
    $region20: #{tpu_custom_call.1} parent=1 // pred_region
      %42 = dma.done [#allocation7], 2048
    $region21: #{tpu_custom_call.1} parent=1 // pred_fallthru
      _
    %p44 = scmp.eq.s32.totalorder 0, 0
    // Predicated region
    $region22: #{tpu_custom_call.1} parent=1 // pred_check
      %p45 = pneg %p44
    $region23: #{tpu_custom_call.1} parent=1 // pred_check_branch
      %47 = sbr.rel (%p45) target = $region25
    $region24: #{tpu_custom_call.1} parent=1 // pred_region
      %v48 = vld [vmem:[%s2] sm:$0x3]
      %v50 = vlaneseq
      %v51 = vshrl.u32 %v50, 7
      %v52 = vsub.s32 0, %v51
      %v53 = vrot.slane %v48, %v52
      %v54 = vlaneseq
      %v55 = vshrl.u32 %v54, 7
      %v56 = vsub.s32 1, %v55
      %v57 = vrot.slane %v48, %v56
      %60 = vst [vmem:[#allocation2] sm:$0xff] %v53
      %61 = vst [vmem:[#allocation2 + $0x8] sm:$0xff] %v57
      %62 = vst [vmem:[#allocation2 + $0x10] sm:$0xff] %v53
      %63 = vst [vmem:[#allocation2 + $0x18] sm:$0xff] %v57
    $region25: #{tpu_custom_call.1} parent=1 // pred_fallthru
      _
    %v64 = vld [vmem:[#allocation2] sm:$0xff]
    %v65 = vld [vmem:[#allocation2 + $0x8] sm:$0xff]
    %v66 = vld [vmem:[#allocation2 + $0x10] sm:$0xff]
    %v67 = vld [vmem:[#allocation2 + $0x18] sm:$0xff]
    %v68 = vld [vmem:[#allocation3] sm:$0xf]
    %v69 = vld [vmem:[#allocation3 + $0x4] sm:$0xf]
    %v70 = vld [vmem:[#allocation6] sm:$0xff]
    %v71 = vld [vmem:[#allocation6 + $0x8] sm:$0xff]
    %v72 = vld [vmem:[#allocation6 + $0x10] sm:$0xff]
    %v73 = vld [vmem:[#allocation6 + $0x18] sm:$0xff]
    %v74 = vld [vmem:[#allocation6 + $0x20] sm:$0xff]
    %v75 = vld [vmem:[#allocation6 + $0x28] sm:$0xff]
    %v76 = vld [vmem:[#allocation6 + $0x30] sm:$0xff]
    %v77 = vld [vmem:[#allocation6 + $0x38] sm:$0xff]
    %v78 = vld [vmem:[#allocation6 + $0x40] sm:$0xff]
    %v79 = vld [vmem:[#allocation6 + $0x48] sm:$0xff]
    %v80 = vld [vmem:[#allocation6 + $0x50] sm:$0xff]
    %v81 = vld [vmem:[#allocation6 + $0x58] sm:$0xff]
    %v82 = vld [vmem:[#allocation6 + $0x60] sm:$0xff]
    %v83 = vld [vmem:[#allocation6 + $0x68] sm:$0xff]
    %v84 = vld [vmem:[#allocation6 + $0x70] sm:$0xff]
    %v85 = vld [vmem:[#allocation6 + $0x78] sm:$0xff]
    %v88 = vunpack.c.l.b16 %v68
    %v89 = vunpack.c.l.b16 %v69
    %v90 = vpack.c.b16 %v89, %v88
    %v108 = vunpack.c.l.b16 %v70
    %v109 = vunpack.c.h.b16 %v70
    %v110 = vunpack.c.l.b16 %v71
    %v111 = vunpack.c.h.b16 %v71
    %v112 = vunpack.c.l.b16 %v72
    %v113 = vunpack.c.h.b16 %v72
    %v114 = vunpack.c.l.b16 %v73
    %v115 = vunpack.c.h.b16 %v73
    %v116 = vunpack.c.l.b16 %v74
    %v117 = vunpack.c.h.b16 %v74
    %v118 = vunpack.c.l.b16 %v75
    %v119 = vunpack.c.h.b16 %v75
    %v120 = vunpack.c.l.b16 %v76
    %v121 = vunpack.c.h.b16 %v76
    %v122 = vunpack.c.l.b16 %v77
    %v123 = vunpack.c.h.b16 %v77
    %v124 = vunpack.c.l.b16 %v78
    %v125 = vunpack.c.h.b16 %v78
    %v126 = vunpack.c.l.b16 %v79
    %v127 = vunpack.c.h.b16 %v79
    %v128 = vunpack.c.l.b16 %v80
    %v129 = vunpack.c.h.b16 %v80
    %v130 = vunpack.c.l.b16 %v81
    %v131 = vunpack.c.h.b16 %v81
    %v132 = vunpack.c.l.b16 %v82
    %v133 = vunpack.c.h.b16 %v82
    %v134 = vunpack.c.l.b16 %v83
    %v135 = vunpack.c.h.b16 %v83
    %v136 = vunpack.c.l.b16 %v84
    %v137 = vunpack.c.h.b16 %v84
    %v138 = vunpack.c.l.b16 %v85
    %v139 = vunpack.c.h.b16 %v85
    %v140 = vpack.c.b16 %v110, %v108
    %v141 = vpack.c.b16 %v111, %v109
    %v142 = vpack.c.b16 %v114, %v112
    %v143 = vpack.c.b16 %v115, %v113
    %v144 = vpack.c.b16 %v118, %v116
    %v145 = vpack.c.b16 %v119, %v117
    %v146 = vpack.c.b16 %v122, %v120
    %v147 = vpack.c.b16 %v123, %v121
    %v148 = vpack.c.b16 %v126, %v124
    %v149 = vpack.c.b16 %v127, %v125
    %v150 = vpack.c.b16 %v130, %v128
    %v151 = vpack.c.b16 %v131, %v129
    %v152 = vpack.c.b16 %v134, %v132
    %v153 = vpack.c.b16 %v135, %v133
    %v154 = vpack.c.b16 %v138, %v136
    %v155 = vpack.c.b16 %v139, %v137
    %172 = vmatprep.subr.bf16.mxu0 %v155
    %173 = vmatpush1.bf16.msra.mxu0 %v154
    %174 = vmatprep.subr.bf16.mxu0 %v153
    %175 = vmatpush1.bf16.msra.mxu0 %v152
    %176 = vmatprep.subr.bf16.mxu0 %v151
    %177 = vmatpush1.bf16.msra.mxu0 %v150
    %178 = vmatprep.subr.bf16.mxu0 %v149
    %179 = vmatpush1.bf16.msra.mxu0 %v148
    %180 = vmatprep.subr.bf16.mxu0 %v147
    %181 = vmatpush1.bf16.msra.mxu0 %v146
    %182 = vmatprep.subr.bf16.mxu0 %v145
    %183 = vmatpush1.bf16.msra.mxu0 %v144
    %184 = vmatprep.subr.bf16.mxu0 %v143
    %185 = vmatpush1.bf16.msra.mxu0 %v142
    %186 = vmatprep.subr.bf16.mxu0 %v141
    %187 = vmatpush1.bf16.msra.mxu0 %v140
    %188 = vmatprep.subr.bf16.mxu0 0
    %189 = vmatpush2.bf16.msra.mxu0 0
    %190 = vmatprep.subr.bf16.mxu0 0
    %191 = vmatpush2.bf16.msra.mxu0 0
    %192 = vmatprep.subr.bf16.mxu0 0
    %193 = vmatpush2.bf16.msra.mxu0 0
    %194 = vmatprep.subr.bf16.mxu0 0
    %195 = vmatpush2.bf16.msra.mxu0 0
    %196 = vmatprep.subr.bf16.mxu0 0
    %197 = vmatpush2.bf16.msra.mxu0 0
    %198 = vmatprep.subr.bf16.mxu0 0
    %199 = vmatpush2.bf16.msra.mxu0 0
    %200 = vmatprep.subr.bf16.mxu0 0
    %201 = vmatpush2.bf16.msra.mxu0 0
    %202 = vmatprep.subr.bf16.mxu0 0
    %203 = vmatpush2.bf16.msra.mxu0 0
    %204 = vmatprep.mubr.bf16.mxu0 0
    %205 = vmatmul.mubr.bf16.gmra.mxu0 %v90
    %v206 = vpop.f32.mrf.mxu0
    %v207 = vadd.f32 0.0, %v206
    %v208 = vpop.f32.mrf.mxu0
    %v209 = vadd.f32 0.0, %v208
    %v210 = vpop.f32.mrf.mxu0
    %v211 = vadd.f32 0.0, %v210
    %v212 = vpop.f32.mrf.mxu0
    %v213 = vadd.f32 0.0, %v212
    %214 = vdwg.mxu0
    %v215 = vadd.f32 %v64, %v207
    %v216 = vadd.f32 %v65, %v209
    %v217 = vadd.f32 %v66, %v211
    %v218 = vadd.f32 %v67, %v213
    %219 = vst [vmem:[#allocation2] sm:$0xff] %v215
    %220 = vst [vmem:[#allocation2 + $0x8] sm:$0xff] %v216
    %221 = vst [vmem:[#allocation2 + $0x10] sm:$0xff] %v217
    %222 = vst [vmem:[#allocation2 + $0x18] sm:$0xff] %v218
    // Predicated region
    $region26: #{tpu_custom_call.1} parent=1 // pred_check
      %p223 = pneg %p44
    $region27: #{tpu_custom_call.1} parent=1 // pred_check_branch
      %225 = sbr.rel (%p223) target = $region29
    $region28: #{tpu_custom_call.1} parent=1 // pred_region
      %v226 = vld [vmem:[#allocation2] sm:$0xff]
      %v227 = vld [vmem:[#allocation2 + $0x8] sm:$0xff]
      %v228 = vld [vmem:[#allocation2 + $0x10] sm:$0xff]
      %v229 = vld [vmem:[#allocation2 + $0x18] sm:$0xff]
      %v230 = vsub.f32 0.0, %v227
      %v231 = vsub.f32 0.0, %v229
      %v232 = vmul.f32 %v230, 1.442695
      %v233 = vpow.pop %v232
      %v234 = vmul.f32 %v231, 1.442695
      %v235 = vpow.pop %v234
      %v236 = vadd.f32 %v233, 1.0
      %v237 = vadd.f32 %v235, 1.0
      %v238 = vrcp.pop %v236
      %v239 = vrcp.pop %v237
      %v240 = vmul.f32 %v227, %v238
      %v241 = vmul.f32 %v229, %v239
      %v242 = vmul.f32 %v226, %v240
      %v243 = vmul.f32 %v228, %v241
      %244 = vst [vmem:[#allocation8] sm:$0xff] %v242
      %245 = vst [vmem:[#allocation8 + $0x8] sm:$0xff] %v243
    $region29: #{tpu_custom_call.1} parent=1 // pred_fallthru
      _
    // Predicated region
    $region30: #{tpu_custom_call.1} parent=1 // pred_check
      _
    $region31: #{tpu_custom_call.1} parent=1 // pred_check_branch
      %247 = sbr.rel (0) target = $region33
    $region32: #{tpu_custom_call.1} parent=1 // pred_region
      %s249 = ssub.s32 256, 256
      %250 = vsyncadd [#allocation5], %s249
      %s251 = sshll.u32 [#allocation8], 4
      %s252 = int_to_ptr.vmem [resolvable:$true] %s251
      %257 = dma.vmem_to_hbm [thread:$0]  %s252, 256, %s3, [#allocation5], 128, 128, 8
    $region33: #{tpu_custom_call.1} parent=1 // pred_fallthru
      _
    // Predicated region
    $region34: #{tpu_custom_call.1} parent=1 // pred_check
      _
    $region35: #{tpu_custom_call.1} parent=1 // pred_check_branch
      %259 = sbr.rel (0) target = $region37
    $region36: #{tpu_custom_call.1} parent=1 // pred_region
      %260 = dma.done [#allocation5], 256
    $region37: #{tpu_custom_call.1} parent=1 // pred_fallthru
      _
    %261 = vsyncpa [#allocation4], 1
    %262 = vsyncpa [#allocation7], 1
    %263 = vsyncpa [#allocation5], 1

</llo_original>
